<compile_context>
chip_gen: v6e
topology: v6e:2x2x1
jax: 0.10.0
libtpu: 0.0.40
codegen_flags: <defaults>
</compile_context>

<pallas_src>
import functools

import jax
import jax.numpy as jnp
from jax import lax
from jax.experimental import pallas as pl
from jax.experimental.pallas import tpu as pltpu


_FALLBACK_VMEM_CAP = 64 * 1024 * 1024  # v7x per-TensorCore VMEM (smallest in fleet)


def _vmem_capacity_bytes():
    """Per-core VMEM capacity; conservative v7x fallback if the query fails."""
    try:
        cap = int(getattr(pltpu.get_tpu_info(), "vmem_capacity_bytes", 0))
        if cap > 0:
            return cap
    except Exception:
        pass
    return _FALLBACK_VMEM_CAP


def _pick_tile(C, HW, x_itemsize, budget_bytes, tile_p):
    """Largest pixel tile (multiple of 512 lanes) whose real VMEM footprint
    fits in budget_bytes: double-buffered logits + targets blocks, two f32
    scratch accumulators (8-sublane padded) and the elementwise temporaries
    Mosaic materializes for the log-softmax body."""
    if tile_p is not None:                       # explicit override (tests / tuning)
        if HW <= tile_p:
            return HW                            # full-extent block (always legal)
        return max(128, (tile_p // 128) * 128)

    sub_mult = max(8, 32 // max(x_itemsize, 1))  # 8 for f32, 16 for bf16, 32 for int8
    c_pad = -(-C // sub_mult) * sub_mult         # sublane-padded class count

    logits_db = 2 * c_pad * x_itemsize           # 2 pipeline buffers, padded C
    targets_db = 2 * 32                          # (1,1,tp) pads to 32 B/pixel per buffer
    scratch = 2 * 8 * 4                          # two f32 accumulators, 8-sublane padded
    temps = 16 * c_pad + 256                     # ~4 class-shaped + ~8 lane-wide f32 temps
    per_pixel = logits_db + targets_db + scratch + temps

    tp = budget_bytes // per_pixel
    tp = min(tp, 1 << 18)                        # sanity cap on block width
    if HW <= tp:
        return HW                                # full-extent block (always legal)
    if tp >= 512:
        return (tp // 512) * 512                 # lane-dense, long contiguous DMA runs
    return max(128, (tp // 128) * 128)


def _ce2d_kernel(logits_ref, targets_ref, loss_ref, cnt_ref,
                 acc_loss_ref, acc_cnt_ref, *,
                 hw, tp, tiles_per_split, ignore_index):
    """Per (split, batch, pixel-tile): accumulate sum_i [logsumexp(x_i) - x_i[t_i]]."""
    s = pl.program_id(0)
    p = pl.program_id(2)

    @pl.when(p == 0)
    def _():
        acc_loss_ref[...] = jnp.zeros_like(acc_loss_ref)
        acc_cnt_ref[...] = jnp.zeros_like(acc_cnt_ref)

    x = logits_ref[...].astype(jnp.float32)       # (1, C, TP), classes on sublanes
    t = targets_ref[...].astype(jnp.int32)        # (1, 1, TP), cast on the VMEM tile

    # numerically stable log-softmax denominator: class-axis (sublane) reduce -> XLU
    m = jnp.max(x, axis=1, keepdims=True)                                   # (1,1,TP)
    lse = m + jnp.log(jnp.sum(jnp.exp(x - m), axis=1, keepdims=True))       # (1,1,TP)

    # gather the target-class logit via a one-hot compare (C is small)
    cls = lax.broadcasted_iota(jnp.int32, x.shape, 1)                       # (1,C,TP)
    tgt_logit = jnp.sum(jnp.where(cls == t, x, 0.0), axis=1, keepdims=True)

    per_pix = lse - tgt_logit                                               # (1,1,TP)
    keep = t != ignore_index

    # intended (unclamped) tile index; the index_map clamps the DMA, we mask here
    tile = s * tiles_per_split + p
    start = tile * tp
    is_edge = start + tp > hw        # ragged tail tile or clamped duplicate tile

    @pl.when(jnp.logical_not(is_edge))
    def _():                                       # interior fast path: no iota/compare
        acc_loss_ref[...] += jnp.where(keep, per_pix, 0.0)
        acc_cnt_ref[...] += jnp.where(keep, 1.0, 0.0)

    @pl.when(is_edge)
    def _():                                       # slow path: mask pixels past HW
        pix = start + lax.broadcasted_iota(jnp.int32, t.shape, 2)
        valid = jnp.logical_and(keep, pix < hw)
        acc_loss_ref[...] += jnp.where(valid, per_pix, 0.0)
        acc_cnt_ref[...] += jnp.where(valid, 1.0, 0.0)

    @pl.when(p == pl.num_programs(2) - 1)
    def _():                                       # one cross-lane reduce per (split, n)
        loss_ref[...] = jnp.sum(acc_loss_ref[...], axis=-1,
                                keepdims=True).reshape(loss_ref.shape)
        cnt_ref[...] = jnp.sum(acc_cnt_ref[...], axis=-1,
                               keepdims=True).reshape(cnt_ref.shape)


@functools.partial(jax.jit, static_argnames=("tile_p", "ignore_index"))
def cross_entropy_loss_2d(outputs, targets, tile_p=None, ignore_index=-100):
    """Equivalent of CrossEntropyLoss2d()(outputs, targets).

    outputs: float [N, C, H, W] logits (f32 or bf16; compute is f32 in-kernel)
    targets: int   [N, H, W]    class indices; pixels equal to ignore_index are skipped
    returns: scalar float32 mean loss (weight=None, size_average=True, reduce=True)

    Notes: if every pixel equals ignore_index the result is NaN (0/0), matching
    PyTorch. Target values outside [0, C) that are not ignore_index are a
    precondition violation (they contribute logsumexp instead of raising).
    """
    # TODO(synk): per-class `weight` vector of nn.NLLLoss is not implemented
    # (module default is weight=None).
    N, C, H, W = outputs.shape
    HW = H * W

    logits = outputs.reshape(N, C, HW)            # free reshape of NCHW
    tgt = targets.reshape(N, 1, HW)               # native dtype; cast in-kernel

    cap = _vmem_capacity_bytes()
    budget = int(cap * 0.6)
    vmem_limit = int(min(cap - (8 << 20), budget + (32 << 20)))

    x_itemsize = jnp.dtype(outputs.dtype).itemsize
    tp = _pick_tile(C, HW, x_itemsize, budget, tile_p)

    num_tiles = (HW + tp - 1) // tp
    # Core-split: with a single image, split the pixel-tile axis so v7x's two
    # TensorCores both get work (harmless extra grid dim on 1-TC chips).
    splits = 2 if (N == 1 and num_tiles >= 2) else 1
    tiles_per_split = (num_tiles + splits - 1) // splits
    grid = (splits, N, tiles_per_split)

    def _tile_idx(s, p):
        # Clamp so the DMA never starts fully out of bounds; the kernel masks
        # the duplicated tile via its intended (unclamped) pixel index.
        return jnp.minimum(s * tiles_per_split + p, num_tiles - 1)

    loss_sums, counts = pl.pallas_call(
        functools.partial(_ce2d_kernel, hw=HW, tp=tp,
                          tiles_per_split=tiles_per_split,
                          ignore_index=ignore_index),
        out_shape=(jax.ShapeDtypeStruct((splits, N, 1, 1), jnp.float32),
                   jax.ShapeDtypeStruct((splits, N, 1, 1), jnp.float32)),
        grid_spec=pltpu.PrefetchScalarGridSpec(
            num_scalar_prefetch=0,
            grid=grid,
            in_specs=[
                pl.BlockSpec((1, C, tp), lambda s, n, p: (n, 0, _tile_idx(s, p))),
                pl.BlockSpec((1, 1, tp), lambda s, n, p: (n, 0, _tile_idx(s, p))),
            ],
            out_specs=[
                pl.BlockSpec((1, 1, 1, 1), lambda s, n, p: (s, n, 0, 0)),
                pl.BlockSpec((1, 1, 1, 1), lambda s, n, p: (s, n, 0, 0)),
            ],
            scratch_shapes=[pltpu.VMEM((1, 1, tp), jnp.float32),
                            pltpu.VMEM((1, 1, tp), jnp.float32)],
        ),
        compiler_params=pltpu.CompilerParams(
            dimension_semantics=("parallel", "parallel", "arbitrary"),
            vmem_limit_bytes=vmem_limit),
    )(logits, tgt)

    total = jnp.sum(loss_sums)
    count = jnp.sum(counts)
    return (total / count).astype(jnp.float32)


def _reference_loss(outputs, targets, ignore_index=-100):
    """Pure-JAX reference: NLLLoss(log_softmax(outputs, dim=1), targets), mean."""
    logp = jax.nn.log_softmax(outputs.astype(jnp.float32), axis=1)           # [N,C,H,W]
    t = targets.astype(jnp.int32)
    safe_t = jnp.where(t == ignore_index, 0, t)
    gathered = jnp.take_along_axis(logp, safe_t[:, None, :, :], axis=1)[:, 0]  # [N,H,W]
    valid = (t != ignore_index)
    return -(jnp.sum(jnp.where(valid, gathered, 0.0)) /
             jnp.sum(valid.astype(jnp.float32)))


if __name__ == "__main__":
    key = jax.random.PRNGKey(0)
    k1, k2, k3, k4, k5 = jax.random.split(key, 5)

    # Test 1: default auto-tiling path (N >= 2, no core split, single tile).
    N, C, H, W = 2, 4, 16, 16
    outputs = jax.random.normal(k1, (N, C, H, W), dtype=jnp.float32)
    targets = jax.random.randint(k2, (N, H, W), 0, C, dtype=jnp.int32)
    loss = jax.block_until_ready(cross_entropy_loss_2d(outputs, targets))
    ref = _reference_loss(outputs, targets)
    assert jnp.allclose(loss, ref, atol=1e-5, rtol=1e-5), (loss, ref)

    # Test 2: N=1 core-split path + ragged pixel tiles + ignore_index pixels.
    N2, C2, H2, W2 = 1, 5, 18, 18
    outputs2 = jax.random.normal(k3, (N2, C2, H2, W2), dtype=jnp.float32)
    targets2 = jax.random.randint(k4, (N2, H2, W2), 0, C2, dtype=jnp.int32)
    ignore_mask = jax.random.uniform(k5, (N2, H2, W2)) < 0.1
    targets2 = jnp.where(ignore_mask, -100, targets2)
    loss2 = jax.block_until_ready(
        cross_entropy_loss_2d(outputs2, targets2, tile_p=128))
    ref2 = _reference_loss(outputs2, targets2, ignore_index=-100)
    assert jnp.allclose(loss2, ref2, atol=1e-5, rtol=1e-5), (loss2, ref2)

    print("KERNEL_OK")
</pallas_src>

<mosaic_0001>
module attributes {stable_mosaic.version = 11 : i64} {
  func.func @_ce2d_kernel(%arg0: i32, %arg1: i32, %arg2: i32, %arg3: memref<1x4x256xf32, #tpu.memory_space<vmem>>, %arg4: memref<1x1x256xi32, #tpu.memory_space<vmem>>, %arg5: memref<1x1x1x1xf32, #tpu.memory_space<vmem>>, %arg6: memref<1x1x1x1xf32, #tpu.memory_space<vmem>>, %arg7: memref<1x1x256xf32, #tpu.memory_space<vmem>>, %arg8: memref<1x1x256xf32, #tpu.memory_space<vmem>>) attributes {dimension_semantics = [#tpu.dimension_semantics<parallel>, #tpu.dimension_semantics<parallel>, #tpu.dimension_semantics<arbitrary>], iteration_bounds = array<i64: 1, 2, 1>, scalar_prefetch = 0 : i64, scratch_operands = 2 : i64, tpu.core_type = #tpu.core_type<tc>, window_params = [{transform_indices = @transform_0, window_bounds = array<i64: 1, 4, 256>}, {transform_indices = @transform_1, window_bounds = array<i64: 1, 1, 256>}, {transform_indices = @transform_2, window_bounds = array<i64: 1, 1, 1, 1>}, {transform_indices = @transform_3, window_bounds = array<i64: 1, 1, 1, 1>}]} {
    %c0_i32 = arith.constant 0 : i32
    %0 = arith.cmpi eq, %arg2, %c0_i32 : i32
    %1 = arith.extui %0 : i1 to i32
    %c0_i32_0 = arith.constant 0 : i32
    %2 = arith.cmpi ne, %1, %c0_i32_0 : i32
    scf.if %2 {
      %cst_15 = arith.constant 0.000000e+00 : f32
      %37 = vector.broadcast %cst_15 : f32 to vector<1x1x256xf32>
      %c0_16 = arith.constant 0 : index
      %c0_17 = arith.constant 0 : index
      %c0_18 = arith.constant 0 : index
      %38 = vector.load %arg7[%c0_16, %c0_17, %c0_18] : memref<1x1x256xf32, #tpu.memory_space<vmem>>, vector<1x1x256xf32>
      tpu.vector_store %arg7[%c0_16, %c0_17, %c0_18], %37 {strides = array<i32>} : memref<1x1x256xf32, #tpu.memory_space<vmem>>, vector<1x1x256xf32>,
      %cst_19 = arith.constant 0.000000e+00 : f32
      %39 = vector.broadcast %cst_19 : f32 to vector<1x1x256xf32>
      %c0_20 = arith.constant 0 : index
      %c0_21 = arith.constant 0 : index
      %c0_22 = arith.constant 0 : index
      %40 = vector.load %arg8[%c0_20, %c0_21, %c0_22] : memref<1x1x256xf32, #tpu.memory_space<vmem>>, vector<1x1x256xf32>
      tpu.vector_store %arg8[%c0_20, %c0_21, %c0_22], %39 {strides = array<i32>} : memref<1x1x256xf32, #tpu.memory_space<vmem>>, vector<1x1x256xf32>,
    } else {
    }
    %c0 = arith.constant 0 : index
    %c0_1 = arith.constant 0 : index
    %c0_2 = arith.constant 0 : index
    %3 = vector.load %arg3[%c0, %c0_1, %c0_2] : memref<1x4x256xf32, #tpu.memory_space<vmem>>, vector<1x4x256xf32>
    %c0_3 = arith.constant 0 : index
    %c0_4 = arith.constant 0 : index
    %c0_5 = arith.constant 0 : index
    %4 = vector.load %arg4[%c0_3, %c0_4, %c0_5] : memref<1x1x256xi32, #tpu.memory_space<vmem>>, vector<1x1x256xi32>
    %cst = arith.constant dense<0xFF800000> : vector<1x256xf32>
    %5 = vector.multi_reduction <maximumf>, %3, %cst [1] : vector<1x4x256xf32> to vector<1x256xf32>
    %6 = vector.shape_cast %5 : vector<1x256xf32> to vector<1x1x256xf32>
    %7 = vector.broadcast %6 : vector<1x1x256xf32> to vector<1x4x256xf32>
    %8 = arith.subf %3, %7 : vector<1x4x256xf32>
    %9 = math.exp %8 : vector<1x4x256xf32>
    %cst_6 = arith.constant dense<0.000000e+00> : vector<1x256xf32>
    %10 = vector.multi_reduction <add>, %9, %cst_6 [1] : vector<1x4x256xf32> to vector<1x256xf32>
    %11 = vector.shape_cast %10 : vector<1x256xf32> to vector<1x1x256xf32>
    %12 = math.log %11 : vector<1x1x256xf32>
    %13 = arith.addf %6, %12 : vector<1x1x256xf32>
    %14 = tpu.iota {dimensions = array<i32: 1>} : vector<1x4x256xi32>
    %15 = vector.broadcast %4 : vector<1x1x256xi32> to vector<1x4x256xi32>
    %16 = arith.cmpi eq, %14, %15 : vector<1x4x256xi32>
    %cst_7 = arith.constant 0.000000e+00 : f32
    %17 = vector.broadcast %cst_7 : f32 to vector<1x4x256xf32>
    %18 = arith.select %16, %3, %17 : vector<1x4x256xi1>, vector<1x4x256xf32>
    %cst_8 = arith.constant dense<0.000000e+00> : vector<1x256xf32>
    %19 = vector.multi_reduction <add>, %18, %cst_8 [1] : vector<1x4x256xf32> to vector<1x256xf32>
    %20 = vector.shape_cast %19 : vector<1x256xf32> to vector<1x1x256xf32>
    %21 = arith.subf %13, %20 : vector<1x1x256xf32>
    %c-100_i32 = arith.constant -100 : i32
    %22 = vector.broadcast %c-100_i32 : i32 to vector<1x1x256xi32>
    %23 = arith.cmpi ne, %4, %22 : vector<1x1x256xi32>
    %c1_i32 = arith.constant 1 : i32
    %24 = arith.muli %arg0, %c1_i32 : i32
    %25 = arith.addi %24, %arg2 : i32
    %c256_i32 = arith.constant 256 : i32
    %26 = arith.muli %25, %c256_i32 : i32
    %c256_i32_9 = arith.constant 256 : i32
    %27 = arith.addi %26, %c256_i32_9 : i32
    %c256_i32_10 = arith.constant 256 : i32
    %28 = arith.cmpi sgt, %27, %c256_i32_10 : i32
    %true = arith.constant true
    %29 = arith.xori %28, %true : i1
    %30 = arith.extui %29 : i1 to i32
    %c0_i32_11 = arith.constant 0 : i32
    %31 = arith.cmpi ne, %30, %c0_i32_11 : i32
    scf.if %31 {
      %c0_15 = arith.constant 0 : index
      %c0_16 = arith.constant 0 : index
      %c0_17 = arith.constant 0 : index
      %37 = vector.load %arg7[%c0_15, %c0_16, %c0_17] : memref<1x1x256xf32, #tpu.memory_space<vmem>>, vector<1x1x256xf32>
      %cst_18 = arith.constant 0.000000e+00 : f32
      %38 = vector.broadcast %cst_18 : f32 to vector<1x1x256xf32>
      %39 = arith.select %23, %21, %38 : vector<1x1x256xi1>, vector<1x1x256xf32>
      %40 = arith.addf %37, %39 : vector<1x1x256xf32>
      %c0_19 = arith.constant 0 : index
      %c0_20 = arith.constant 0 : index
      %c0_21 = arith.constant 0 : index
      %41 = vector.load %arg7[%c0_19, %c0_20, %c0_21] : memref<1x1x256xf32, #tpu.memory_space<vmem>>, vector<1x1x256xf32>
      tpu.vector_store %arg7[%c0_19, %c0_20, %c0_21], %40 {strides = array<i32>} : memref<1x1x256xf32, #tpu.memory_space<vmem>>, vector<1x1x256xf32>,
      %c0_22 = arith.constant 0 : index
      %c0_23 = arith.constant 0 : index
      %c0_24 = arith.constant 0 : index
      %42 = vector.load %arg8[%c0_22, %c0_23, %c0_24] : memref<1x1x256xf32, #tpu.memory_space<vmem>>, vector<1x1x256xf32>
      %cst_25 = arith.constant 1.000000e+00 : f32
      %cst_26 = arith.constant 0.000000e+00 : f32
      %43 = vector.broadcast %cst_25 : f32 to vector<1x1x256xf32>
      %44 = vector.broadcast %cst_26 : f32 to vector<1x1x256xf32>
      %45 = arith.select %23, %43, %44 : vector<1x1x256xi1>, vector<1x1x256xf32>
      %46 = arith.addf %42, %45 : vector<1x1x256xf32>
      %c0_27 = arith.constant 0 : index
      %c0_28 = arith.constant 0 : index
      %c0_29 = arith.constant 0 : index
      %47 = vector.load %arg8[%c0_27, %c0_28, %c0_29] : memref<1x1x256xf32, #tpu.memory_space<vmem>>, vector<1x1x256xf32>
      tpu.vector_store %arg8[%c0_27, %c0_28, %c0_29], %46 {strides = array<i32>} : memref<1x1x256xf32, #tpu.memory_space<vmem>>, vector<1x1x256xf32>,
    } else {
    }
    %32 = arith.extui %28 : i1 to i32
    %c0_i32_12 = arith.constant 0 : i32
    %33 = arith.cmpi ne, %32, %c0_i32_12 : i32
    scf.if %33 {
      %37 = tpu.iota {dimensions = array<i32: 2>} : vector<1x1x256xi32>
      %38 = vector.broadcast %26 : i32 to vector<1x1x256xi32>
      %39 = arith.addi %38, %37 : vector<1x1x256xi32>
      %c256_i32_15 = arith.constant 256 : i32
      %40 = vector.broadcast %c256_i32_15 : i32 to vector<1x1x256xi32>
      %41 = arith.cmpi slt, %39, %40 : vector<1x1x256xi32>
      %42 = arith.andi %23, %41 : vector<1x1x256xi1>
      %c0_16 = arith.constant 0 : index
      %c0_17 = arith.constant 0 : index
      %c0_18 = arith.constant 0 : index
      %43 = vector.load %arg7[%c0_16, %c0_17, %c0_18] : memref<1x1x256xf32, #tpu.memory_space<vmem>>, vector<1x1x256xf32>
      %cst_19 = arith.constant 0.000000e+00 : f32
      %44 = vector.broadcast %cst_19 : f32 to vector<1x1x256xf32>
      %45 = arith.select %42, %21, %44 : vector<1x1x256xi1>, vector<1x1x256xf32>
      %46 = arith.addf %43, %45 : vector<1x1x256xf32>
      %c0_20 = arith.constant 0 : index
      %c0_21 = arith.constant 0 : index
      %c0_22 = arith.constant 0 : index
      %47 = vector.load %arg7[%c0_20, %c0_21, %c0_22] : memref<1x1x256xf32, #tpu.memory_space<vmem>>, vector<1x1x256xf32>
      tpu.vector_store %arg7[%c0_20, %c0_21, %c0_22], %46 {strides = array<i32>} : memref<1x1x256xf32, #tpu.memory_space<vmem>>, vector<1x1x256xf32>,
      %c0_23 = arith.constant 0 : index
      %c0_24 = arith.constant 0 : index
      %c0_25 = arith.constant 0 : index
      %48 = vector.load %arg8[%c0_23, %c0_24, %c0_25] : memref<1x1x256xf32, #tpu.memory_space<vmem>>, vector<1x1x256xf32>
      %cst_26 = arith.constant 1.000000e+00 : f32
      %cst_27 = arith.constant 0.000000e+00 : f32
      %49 = vector.broadcast %cst_26 : f32 to vector<1x1x256xf32>
      %50 = vector.broadcast %cst_27 : f32 to vector<1x1x256xf32>
      %51 = arith.select %42, %49, %50 : vector<1x1x256xi1>, vector<1x1x256xf32>
      %52 = arith.addf %48, %51 : vector<1x1x256xf32>
      %c0_28 = arith.constant 0 : index
      %c0_29 = arith.constant 0 : index
      %c0_30 = arith.constant 0 : index
      %53 = vector.load %arg8[%c0_28, %c0_29, %c0_30] : memref<1x1x256xf32, #tpu.memory_space<vmem>>, vector<1x1x256xf32>
      tpu.vector_store %arg8[%c0_28, %c0_29, %c0_30], %52 {strides = array<i32>} : memref<1x1x256xf32, #tpu.memory_space<vmem>>, vector<1x1x256xf32>,
    } else {
    }
    %c0_i32_13 = arith.constant 0 : i32
    %34 = arith.cmpi eq, %arg2, %c0_i32_13 : i32
    %35 = arith.extui %34 : i1 to i32
    %c0_i32_14 = arith.constant 0 : i32
    %36 = arith.cmpi ne, %35, %c0_i32_14 : i32
    scf.if %36 {
      %c0_15 = arith.constant 0 : index
      %c0_16 = arith.constant 0 : index
      %c0_17 = arith.constant 0 : index
      %37 = vector.load %arg7[%c0_15, %c0_16, %c0_17] : memref<1x1x256xf32, #tpu.memory_space<vmem>>, vector<1x1x256xf32>
      %cst_18 = arith.constant dense<0.000000e+00> : vector<1x1xf32>
      %38 = vector.multi_reduction <add>, %37, %cst_18 [2] : vector<1x1x256xf32> to vector<1x1xf32>
      %39 = vector.shape_cast %38 : vector<1x1xf32> to vector<1x1x1xf32>
      %40 = vector.shape_cast %39 : vector<1x1x1xf32> to vector<1x1x1x1xf32>
      %c0_19 = arith.constant 0 : index
      %c0_20 = arith.constant 0 : index
      %c0_21 = arith.constant 0 : index
      %c0_22 = arith.constant 0 : index
      %41 = vector.load %arg5[%c0_19, %c0_20, %c0_21, %c0_22] : memref<1x1x1x1xf32, #tpu.memory_space<vmem>>, vector<1x1x1x1xf32>
      tpu.vector_store %arg5[%c0_19, %c0_20, %c0_21, %c0_22], %40 {strides = array<i32>} : memref<1x1x1x1xf32, #tpu.memory_space<vmem>>, vector<1x1x1x1xf32>,
      %c0_23 = arith.constant 0 : index
      %c0_24 = arith.constant 0 : index
      %c0_25 = arith.constant 0 : index
      %42 = vector.load %arg8[%c0_23, %c0_24, %c0_25] : memref<1x1x256xf32, #tpu.memory_space<vmem>>, vector<1x1x256xf32>
      %cst_26 = arith.constant dense<0.000000e+00> : vector<1x1xf32>
      %43 = vector.multi_reduction <add>, %42, %cst_26 [2] : vector<1x1x256xf32> to vector<1x1xf32>
      %44 = vector.shape_cast %43 : vector<1x1xf32> to vector<1x1x1xf32>
      %45 = vector.shape_cast %44 : vector<1x1x1xf32> to vector<1x1x1x1xf32>
      %c0_27 = arith.constant 0 : index
      %c0_28 = arith.constant 0 : index
      %c0_29 = arith.constant 0 : index
      %c0_30 = arith.constant 0 : index
      %46 = vector.load %arg6[%c0_27, %c0_28, %c0_29, %c0_30] : memref<1x1x1x1xf32, #tpu.memory_space<vmem>>, vector<1x1x1x1xf32>
      tpu.vector_store %arg6[%c0_27, %c0_28, %c0_29, %c0_30], %45 {strides = array<i32>} : memref<1x1x1x1xf32, #tpu.memory_space<vmem>>, vector<1x1x1x1xf32>,
    } else {
    }
    return
  }
  func.func @transform_0(%arg0: i32, %arg1: i32, %arg2: i32) -> (i32, i32, i32) {
    %c1_i32 = arith.constant 1 : i32
    %0 = arith.muli %arg0, %c1_i32 : i32
    %1 = arith.addi %0, %arg2 : i32
    %c0_i32 = arith.constant 0 : i32
    %2 = arith.minsi %1, %c0_i32 : i32
    %c0_i32_0 = arith.constant 0 : i32
    %c0_i32_1 = arith.constant 0 : i32
    return %arg1, %c0_i32_0, %2 : i32, i32, i32
  }
  func.func @transform_1(%arg0: i32, %arg1: i32, %arg2: i32) -> (i32, i32, i32) {
    %c1_i32 = arith.constant 1 : i32
    %0 = arith.muli %arg0, %c1_i32 : i32
    %1 = arith.addi %0, %arg2 : i32
    %c0_i32 = arith.constant 0 : i32
    %2 = arith.minsi %1, %c0_i32 : i32
    %c0_i32_0 = arith.constant 0 : i32
    %c0_i32_1 = arith.constant 0 : i32
    return %arg1, %c0_i32_0, %2 : i32, i32, i32
  }
  func.func @transform_2(%arg0: i32, %arg1: i32, %arg2: i32) -> (i32, i32, i32, i32) {
    %c0_i32 = arith.constant 0 : i32
    %c0_i32_0 = arith.constant 0 : i32
    %c0_i32_1 = arith.constant 0 : i32
    return %arg0, %arg1, %c0_i32, %c0_i32_0 : i32, i32, i32, i32
  }
  func.func @transform_3(%arg0: i32, %arg1: i32, %arg2: i32) -> (i32, i32, i32, i32) {
    %c0_i32 = arith.constant 0 : i32
    %c0_i32_0 = arith.constant 0 : i32
    %c0_i32_1 = arith.constant 0 : i32
    return %arg0, %arg1, %c0_i32, %c0_i32_0 : i32, i32, i32, i32
  }
}

</mosaic_0001>

<llo_original>
// kernel: cross_entropy_loss_2d.1
$region0: #{cross_entropy_loss_2d.1}
  #allocation0 [shape = 'u32[]', space=smem, size = 0x4, offset = 0x4, fixed_abs, tag = 'smem constant byte address 0x4 - core index']
  #allocation1 [shape = 'u32[144,128]{1,0:T(1,128)}', space=vmem, size = 0x12000, scoped, tag = 'internal scratch']
  #allocation2 [shape = 'f32[1,1,256]{2,1,0:T(1,128)}', space=vmem, size = 0x400, scoped, tag = 'scratch operand']
  #allocation3 [shape = 'f32[1,1,256]{2,1,0:T(1,128)}', space=vmem, size = 0x400, scoped, tag = 'scratch operand']
  %s0 = inlined_call_operand.vmem [shape: f32[2,4,256], index: 0, kind: input, shape index: {}]
  %s1 = inlined_call_operand.vmem [shape: s32[2,1,256], index: 1, kind: input, shape index: {}]
  %s2 = inlined_call_operand.vmem [shape: f32[1,2,1,1], index: 2, kind: output, shape index: {0}]
  %s3 = inlined_call_operand.vmem [shape: f32[1,2,1,1], index: 3, kind: output, shape index: {1}]
  %4 = xla_tuple %s2, %s3
  %s5 = sld [smem:[#allocation0]]
  $region65: #{cross_entropy_loss_2d.1} parent=0
    _
  %s7 = ssub.s32 1, %s5
  %s8 = scalar_select 0, %s7, %s5
  loop: start=0, step=1, limit=4
  $region2: #{cross_entropy_loss_2d.1} parent=0 // loop_pre_header
    _
  $region3: #{cross_entropy_loss_2d.1} parent=0 // loop_header
    %s10 = sphi 0, %s14
    %p11 = scmp.ge.s32.totalorder %s10, 4
    %s17 = sphi 0, %s36
    %s18 = sphi 0, %s32
    %s19 = sphi 0, %s28
    %s20 = sphi 0, %s17
    %s21 = sphi 0, %s18
    %s22 = sphi 0, %s19
    %s23 = sphi 0, %s20
    %s24 = sphi 0, %s21
    %s25 = sphi 0, %s22
    %s47 = sphi 0, %s49
    %s50 = sphi 0, %s47
    %s51 = sphi 0, %s50
    %s67 = sphi 0, %s51
    %s81 = sphi 0, %s83
    %s84 = sphi 0, %s81
    %s85 = sphi 0, %s84
    %s101 = sphi 0, %s85
    %s109 = sphi 0, %s111
    %s112 = sphi 0, %s109
    %s113 = sphi 0, %s112
    %s129 = sphi 0, %s113
    %s137 = sphi 0, %s139
    %s140 = sphi 0, %s137
    %s141 = sphi 0, %s140
    %s157 = sphi 0, %s141
  $region4: #{cross_entropy_loss_2d.1} parent=0 // loop_header_branch
    %13 = sbr.rel (%p11) target = $region8
  $region5: #{cross_entropy_loss_2d.1} parent=0 // loop_body
    %s15 = ssub.s32 %s10, 1
    %s16 = ssub.s32 %s10, 2
    %s26 = sadd.s32 1, %s19
    %p27 = scmp.ge.s32.totalorder %s26, 1
    %s28 = scalar_select %p27, 0, %s26
    %s29 = sadd.s32 1, %s18
    %s30 = scalar_select %p27, %s29, %s18
    %p31 = scmp.ge.s32.totalorder %s30, 2
    %s32 = scalar_select %p31, 0, %s30
    %s33 = sadd.s32 1, %s17
    %s34 = scalar_select %p31, %s33, %s17
    %p35 = scmp.ge.s32.totalorder %s34, 1
    %s36 = scalar_select %p35, 0, %s34
    %s37 = sadd.s32 %s17, %s19
    %p38 = scmp.lt.s32.totalorder %s37, 0
    %s39 = scalar_select %p38, %s37, 0
    %s40 = sadd.s32 %s36, %s28
    %p41 = scmp.lt.s32.totalorder %s40, 0
    %s42 = scalar_select %p41, %s40, 0
    %s43 = ssub.s32 %s18, %s32
    %s44 = ssub.s32 %s39, %s42
    %s45 = sor.u32 %s43, %s44
    %p46 = scmp.eq.s32.totalorder %s45, 0
    %s48 = sadd.s32 %s47, 1
    %s49 = scalar_select %p46, %s47, %s48
    %p52 = pneg %p46
    %p53 = scmp.eq.s32.totalorder %s10, 1
    %p54 = por %p52, %p53
    %p55 = scmp.ne.s32.totalorder %s47, %s50
    %p56 = scmp.eq.s32.totalorder %s10, 0
    %p57 = por %p55, %p56
    %p58 = scmp.ne.s32.totalorder %s47, %s50
    %p59 = scmp.eq.s32.totalorder %s15, 1
    %p60 = por %p58, %p59
    %p61 = scmp.ne.s32.totalorder %s50, %s51
    %p62 = scmp.eq.s32.totalorder %s15, 0
    %p63 = por %p61, %p62
    %p64 = scmp.ne.s32.totalorder %s50, %s51
    %p65 = scmp.eq.s32.totalorder %s16, 1
    %p66 = por %p64, %p65
    %p68 = scmp.ne.s32.totalorder %s51, %s67
    %p69 = scmp.eq.s32.totalorder %s16, 0
    %p70 = por %p68, %p69
    %s71 = sadd.s32 %s17, %s19
    %p72 = scmp.lt.s32.totalorder %s71, 0
    %s73 = scalar_select %p72, %s71, 0
    %s74 = sadd.s32 %s36, %s28
    %p75 = scmp.lt.s32.totalorder %s74, 0
    %s76 = scalar_select %p75, %s74, 0
    %s77 = ssub.s32 %s18, %s32
    %s78 = ssub.s32 %s73, %s76
    %s79 = sor.u32 %s77, %s78
    %p80 = scmp.eq.s32.totalorder %s79, 0
    %s82 = sadd.s32 %s81, 1
    %s83 = scalar_select %p80, %s81, %s82
    %p86 = pneg %p80
    %p87 = scmp.eq.s32.totalorder %s10, 1
    %p88 = por %p86, %p87
    %p89 = scmp.ne.s32.totalorder %s81, %s84
    %p90 = scmp.eq.s32.totalorder %s10, 0
    %p91 = por %p89, %p90
    %p92 = scmp.ne.s32.totalorder %s81, %s84
    %p93 = scmp.eq.s32.totalorder %s15, 1
    %p94 = por %p92, %p93
    %p95 = scmp.ne.s32.totalorder %s84, %s85
    %p96 = scmp.eq.s32.totalorder %s15, 0
    %p97 = por %p95, %p96
    %p98 = scmp.ne.s32.totalorder %s84, %s85
    %p99 = scmp.eq.s32.totalorder %s16, 1
    %p100 = por %p98, %p99
    %p102 = scmp.ne.s32.totalorder %s85, %s101
    %p103 = scmp.eq.s32.totalorder %s16, 0
    %p104 = por %p102, %p103
    %s105 = ssub.s32 %s17, %s36
    %s106 = ssub.s32 %s18, %s32
    %s107 = sor.u32 %s105, %s106
    %p108 = scmp.eq.s32.totalorder %s107, 0
    %s110 = sadd.s32 %s109, 1
    %s111 = scalar_select %p108, %s109, %s110
    %p114 = pneg %p108
    %p115 = scmp.eq.s32.totalorder %s10, 1
    %p116 = por %p114, %p115
    %p117 = scmp.ne.s32.totalorder %s109, %s112
    %p118 = scmp.eq.s32.totalorder %s10, 0
    %p119 = por %p117, %p118
    %p120 = scmp.ne.s32.totalorder %s109, %s112
    %p121 = scmp.eq.s32.totalorder %s15, 1
    %p122 = por %p120, %p121
    %p123 = scmp.ne.s32.totalorder %s112, %s113
    %p124 = scmp.eq.s32.totalorder %s15, 0
    %p125 = por %p123, %p124
    %p126 = scmp.ne.s32.totalorder %s112, %s113
    %p127 = scmp.eq.s32.totalorder %s16, 1
    %p128 = por %p126, %p127
    %p130 = scmp.ne.s32.totalorder %s113, %s129
    %p131 = scmp.eq.s32.totalorder %s16, 0
    %p132 = por %p130, %p131
    %s133 = ssub.s32 %s17, %s36
    %s134 = ssub.s32 %s18, %s32
    %s135 = sor.u32 %s133, %s134
    %p136 = scmp.eq.s32.totalorder %s135, 0
    %s138 = sadd.s32 %s137, 1
    %s139 = scalar_select %p136, %s137, %s138
    %p142 = pneg %p136
    %p143 = scmp.eq.s32.totalorder %s10, 1
    %p144 = por %p142, %p143
    %p145 = scmp.ne.s32.totalorder %s137, %s140
    %p146 = scmp.eq.s32.totalorder %s10, 0
    %p147 = por %p145, %p146
    %p148 = scmp.ne.s32.totalorder %s137, %s140
    %p149 = scmp.eq.s32.totalorder %s15, 1
    %p150 = por %p148, %p149
    %p151 = scmp.ne.s32.totalorder %s140, %s141
    %p152 = scmp.eq.s32.totalorder %s15, 0
    %p153 = por %p151, %p152
    %p154 = scmp.ne.s32.totalorder %s140, %s141
    %p155 = scmp.eq.s32.totalorder %s16, 1
    %p156 = por %p154, %p155
    %p158 = scmp.ne.s32.totalorder %s141, %s157
    %p159 = scmp.eq.s32.totalorder %s16, 0
    %p160 = por %p158, %p159
    %p161 = scmp.le.s32.totalorder 1, %s10
    %p162 = scmp.lt.s32.totalorder %s10, 3
    %p163 = pnand %p161, %p162
    %p164 = pneg %p163
    // Predicated region
    $region9: #{cross_entropy_loss_2d.1} parent=5 // pred_check
      _
    $region10: #{cross_entropy_loss_2d.1} parent=5 // pred_check_branch
      %166 = sbr.rel (%p163) target = $region12
    $region11: #{cross_entropy_loss_2d.1} parent=5 // pred_region
      %s167 = ssub.s32 %s10, 1
    $region12: #{cross_entropy_loss_2d.1} parent=5 // pred_fallthru
      _
    %p168 = scmp.lt.s32.totalorder %s10, 2
    // Predicated region
    $region13: #{cross_entropy_loss_2d.1} parent=5 // pred_check
      %p169 = pneg %p168
    $region14: #{cross_entropy_loss_2d.1} parent=5 // pred_check_branch
      %171 = sbr.rel (%p169) target = $region16
    $region15: #{cross_entropy_loss_2d.1} parent=5 // pred_region
      // Predicated region
      $region17: #{cross_entropy_loss_2d.1} parent=15 // pred_check
        %p172 = pneg %p57
      $region18: #{cross_entropy_loss_2d.1} parent=15 // pred_check_branch
        %174 = sbr.rel (%p172) target = $region20
      $region19: #{cross_entropy_loss_2d.1} parent=15 // pred_region
        %s175 = sadd.s32 %s17, %s19
        %p176 = scmp.lt.s32.totalorder %s175, 0
        %s177 = scalar_select %p176, %s175, 0
        %s178 = smul.u32 2, %s177
        %p179 = scmp.lt.s32.totalorder %s18, 1
        %s180 = scalar_select %p179, %s18, 1
        %p181 = scmp.lt.s32.totalorder %s178, 1
        %s182 = scalar_select %p181, %s178, 1
        %s183 = smul.addr %s180, 2
        %s184 = sadd.s32 %s182, %s183
        %s185 = smul.addr %s184, 4
        %s186 = scalar_lea.vmem %s0, %s185
        %s187 = sadd.s32 %s17, %s19
        %p188 = scmp.lt.s32.totalorder %s187, 0
        %s189 = scalar_select %p188, %s187, 0
        %s190 = smul.u32 2, %s189
      $region20: #{cross_entropy_loss_2d.1} parent=15 // pred_fallthru
        _
      // Predicated region
      $region21: #{cross_entropy_loss_2d.1} parent=15 // pred_check
        %p191 = pneg %p91
      $region22: #{cross_entropy_loss_2d.1} parent=15 // pred_check_branch
        %193 = sbr.rel (%p191) target = $region24
      $region23: #{cross_entropy_loss_2d.1} parent=15 // pred_region
        %s194 = sadd.s32 %s17, %s19
        %p195 = scmp.lt.s32.totalorder %s194, 0
        %s196 = scalar_select %p195, %s194, 0
        %s197 = smul.u32 2, %s196
        %p198 = scmp.lt.s32.totalorder %s18, 1
        %s199 = scalar_select %p198, %s18, 1
        %p200 = scmp.lt.s32.totalorder %s197, 1
        %s201 = scalar_select %p200, %s197, 1
        %s202 = smul.addr %s199, 2
        %s203 = sadd.s32 %s201, %s202
        %s204 = scalar_lea.vmem %s1, %s203
        %s205 = sadd.s32 %s17, %s19
        %p206 = scmp.lt.s32.totalorder %s205, 0
        %s207 = scalar_select %p206, %s205, 0
        %s208 = smul.u32 2, %s207
      $region24: #{cross_entropy_loss_2d.1} parent=15 // pred_fallthru
        _
    $region16: #{cross_entropy_loss_2d.1} parent=5 // pred_fallthru
      _
    %p209 = scmp.le.s32.totalorder 1, %s10
    %p210 = scmp.lt.s32.totalorder %s10, 3
    %p211 = pnand %p209, %p210
    %p212 = pneg %p211
    // Predicated region
    $region25: #{cross_entropy_loss_2d.1} parent=5 // pred_check
      _
    $region26: #{cross_entropy_loss_2d.1} parent=5 // pred_check_branch
      %214 = sbr.rel (%p211) target = $region28
    $region27: #{cross_entropy_loss_2d.1} parent=5 // pred_region
      %s215 = ssub.s32 %s10, 1
      %s216 = sadd.s32 %s20, %s22
      %p217 = scmp.lt.s32.totalorder %s216, 0
      %s218 = scalar_select %p217, %s216, 0
      %s219 = smul.u32 2, %s218
      %p220 = scmp.lt.s32.totalorder %s21, 1
      %s221 = scalar_select %p220, %s21, 1
      %p222 = scmp.lt.s32.totalorder %s219, 1
      %s223 = scalar_select %p222, %s219, 1
      %s224 = smul.addr %s221, 2
      %s225 = sadd.s32 %s223, %s224
      %s226 = smul.addr %s225, 4
      %s227 = scalar_lea.vmem %s0, %s226
      %p228 = pneg %p63
      %p229 = pneg %p60
      %s230 = sadd.s32 %s20, %s22
      %p231 = scmp.lt.s32.totalorder %s230, 0
      %s232 = scalar_select %p231, %s230, 0
      %s233 = smul.u32 2, %s232
      %p234 = scmp.lt.s32.totalorder %s21, 1
      %s235 = scalar_select %p234, %s21, 1
      %p236 = scmp.lt.s32.totalorder %s233, 1
      %s237 = scalar_select %p236, %s233, 1
      %s238 = smul.addr %s235, 2
      %s239 = sadd.s32 %s237, %s238
      %s240 = scalar_lea.vmem %s1, %s239
      %p241 = pneg %p97
      %p242 = pneg %p94
      %p243 = pneg %p125
      %p244 = pneg %p122
      %p245 = scmp.lt.s32.totalorder %s20, 0
      %s246 = scalar_select %p245, %s20, 0
      %p247 = scmp.lt.s32.totalorder %s21, 1
      %s248 = scalar_select %p247, %s21, 1
      %s249 = smul.addr %s246, 2
      %s250 = sadd.s32 %s248, %s249
      %s251 = scalar_lea.vmem %s2, %s250
      %p252 = pneg %p153
      %p253 = pneg %p150
      %p254 = scmp.lt.s32.totalorder %s20, 0
      %s255 = scalar_select %p254, %s20, 0
      %p256 = scmp.lt.s32.totalorder %s21, 1
      %s257 = scalar_select %p256, %s21, 1
      %s258 = smul.addr %s255, 2
      %s259 = sadd.s32 %s257, %s258
      %s260 = scalar_lea.vmem %s3, %s259
      %s261 = sadd.s32 %s20, %s22
      %p262 = scmp.lt.s32.totalorder %s261, 0
      %s263 = scalar_select %p262, %s261, 0
      %s264 = smul.u32 2, %s263
      %p265 = scmp.lt.s32.totalorder %s21, 1
      %s266 = scalar_select %p265, %s21, 1
      %p267 = scmp.lt.s32.totalorder %s264, 1
      %s268 = scalar_select %p267, %s264, 1
      %s269 = smul.addr %s266, 2
      %s270 = sadd.s32 %s268, %s269
      %s271 = smul.addr %s270, 4
      %s272 = scalar_lea.vmem %s0, %s271
      %s273 = sadd.s32 %s20, %s22
      %p274 = scmp.lt.s32.totalorder %s273, 0
      %s275 = scalar_select %p274, %s273, 0
      %s276 = smul.u32 2, %s275
      %s277 = sadd.s32 %s20, %s22
      %p278 = scmp.lt.s32.totalorder %s277, 0
      %s279 = scalar_select %p278, %s277, 0
      %s280 = smul.u32 2, %s279
      %p281 = scmp.lt.s32.totalorder %s21, 1
      %s282 = scalar_select %p281, %s21, 1
      %p283 = scmp.lt.s32.totalorder %s280, 1
      %s284 = scalar_select %p283, %s280, 1
      %s285 = smul.addr %s282, 2
      %s286 = sadd.s32 %s284, %s285
      %s287 = scalar_lea.vmem %s1, %s286
      %s288 = sadd.s32 %s20, %s22
      %p289 = scmp.lt.s32.totalorder %s288, 0
      %s290 = scalar_select %p289, %s288, 0
      %s291 = smul.u32 2, %s290
      %p292 = scmp.lt.s32.totalorder %s20, 0
      %s293 = scalar_select %p292, %s20, 0
      %p294 = scmp.lt.s32.totalorder %s21, 1
      %s295 = scalar_select %p294, %s21, 1
      %s296 = smul.addr %s293, 2
      %s297 = sadd.s32 %s295, %s296
      %s298 = scalar_lea.vmem %s2, %s297
      %p299 = scmp.lt.s32.totalorder %s20, 0
      %s300 = scalar_select %p299, %s20, 0
      %p301 = scmp.lt.s32.totalorder %s21, 1
      %s302 = scalar_select %p301, %s21, 1
      %s303 = smul.addr %s300, 2
      %s304 = sadd.s32 %s302, %s303
      %s305 = scalar_lea.vmem %s3, %s304
      %p306 = scmp.eq.s32.totalorder %s22, 0
      // Predicated region
      $region29: #{cross_entropy_loss_2d.1} parent=27 // pred_check
        %p307 = pneg %p306
      $region30: #{cross_entropy_loss_2d.1} parent=27 // pred_check_branch
        %309 = sbr.rel (%p307) target = $region32
      $region31: #{cross_entropy_loss_2d.1} parent=27 // pred_region
        %v310 = vlaneseq
        %vm311 = vcmp.ge.s32.totalorder %v310, 0
        %vm312 = vcmp.lt.s32.totalorder %v310, 256
        %vm313 = vmand %vm311, %vm312
        %314 = vst.msk [vmem:[#allocation2] sm:$0x3] %vm313, 0.0
        %315 = vst.msk [vmem:[#allocation3] sm:$0x3] %vm313, 0.0
      $region32: #{cross_entropy_loss_2d.1} parent=27 // pred_fallthru
        _
      %v316 = vld [vmem:[%s272] sm:$0xff]
      %v317 = vld [vmem:[%s287] sm:$0x3]
      %v319 = vcombine.high %v316, %v316
      %vm321 = vcmask 1043456
      %v322 = vsel %vm321, %v316, -inf
      %v323 = vrot.slane %v322, 4
      %v324 = vmax.f32 %v322, %v323
      %v325 = vrot.slane %v324, 2
      %v326 = vmax.f32 %v324, %v325
      %v327 = vrot.slane %v326, 1
      %v328 = vmax.f32 %v326, %v327
      %v329 = vsel %vm321, %v319, -inf
      %v330 = vrot.slane %v329, 4
      %v331 = vmax.f32 %v329, %v330
      %v332 = vrot.slane %v331, 2
      %v333 = vmax.f32 %v331, %v332
      %v334 = vrot.slane %v333, 1
      %v335 = vmax.f32 %v333, %v334
      %v338 = vcombine.low %v328, %v335
      %v340 = vsub.f32 %v316, %v338
      %v341 = vmul.f32 %v340, 1.442695
      %v342 = vpow.pop %v341
      %v344 = vcombine.high %v342, %v342
      %v346 = vsel %vm321, %v342, 0.0
      %v347 = vrot.slane %v346, 4
      %v348 = vadd.f32 %v346, %v347
      %v349 = vrot.slane %v348, 2
      %v350 = vadd.f32 %v348, %v349
      %v351 = vrot.slane %v350, 1
      %v352 = vadd.f32 %v350, %v351
      %v353 = vsel %vm321, %v344, 0.0
      %v354 = vrot.slane %v353, 4
      %v355 = vadd.f32 %v353, %v354
      %v356 = vrot.slane %v355, 2
      %v357 = vadd.f32 %v355, %v356
      %v358 = vrot.slane %v357, 1
      %v359 = vadd.f32 %v357, %v358
      %v360 = vlog2.pop %v352
      %v361 = vmul.f32 %v360, 0.6931472
      %v362 = vlog2.pop %v359
      %v363 = vmul.f32 %v362, 0.6931472
      %v364 = vadd.f32 %v328, %v361
      %v365 = vadd.f32 %v335, %v363
      %v366 = vlaneseq
      %v367 = vshrl.u32 %v366, 7
      %v368 = vlaneseq
      %v369 = vshrl.u32 %v368, 7
      %v370 = vsub.s32 0, %v369
      %v371 = vrot.slane %v317, %v370
      %v372 = vlaneseq
      %v373 = vshrl.u32 %v372, 7
      %v374 = vsub.s32 1, %v373
      %v375 = vrot.slane %v317, %v374
      %vm376 = vcmp.eq.s32.totalorder %v367, %v371
      %vm377 = vcmp.eq.s32.totalorder %v367, %v375
      %v378 = vsel %vm376, %v316, 0.0
      %v379 = vsel %vm377, %v319, 0.0
      %v380 = vsel %vm321, %v378, 0.0
      %v381 = vrot.slane %v380, 4
      %v382 = vadd.f32 %v380, %v381
      %v383 = vrot.slane %v382, 2
      %v384 = vadd.f32 %v382, %v383
      %v385 = vrot.slane %v384, 1
      %v386 = vadd.f32 %v384, %v385
      %v387 = vsel %vm321, %v379, 0.0
      %v388 = vrot.slane %v387, 4
      %v389 = vadd.f32 %v387, %v388
      %v390 = vrot.slane %v389, 2
      %v391 = vadd.f32 %v389, %v390
      %v392 = vrot.slane %v391, 1
      %v393 = vadd.f32 %v391, %v392
      %v394 = vsub.f32 %v364, %v386
      %v395 = vsub.f32 %v365, %v393
      %vm396 = vcmp.ne.s32.totalorder %v317, 4294967196
      %s397 = sadd.s32 %s20, %s22
      %s398 = smul.u32 %s397, 256
      %s399 = sadd.s32 %s398, 256
      %p400 = scmp.gt.s32.totalorder %s399, 256
      %p401 = scmp.le.s32.totalorder %s399, 256
      // Predicated region
      $region33: #{cross_entropy_loss_2d.1} parent=27 // pred_check
        %p402 = pneg %p401
      $region34: #{cross_entropy_loss_2d.1} parent=27 // pred_check_branch
        %404 = sbr.rel (%p402) target = $region36
      $region35: #{cross_entropy_loss_2d.1} parent=27 // pred_region
        %v405 = vld [vmem:[#allocation2] sm:$0x3]
        %v408 = vcombine.low %v394, %v395
        %v410 = vunpack.c.l.s4 1966171168
        %v411 = vunpack.c.0.s8 %v410
        %v412 = vlaneseq
        %v413 = vshrl.u32 %v412, 7
        %v414 = vsub.s32 %v411, %v413
        %v415 = vrot.slane %v408, %v414
        %v417 = vunpack.c.l.s4 1966171168
        %v418 = vunpack.c.0.s8 %v417
        %v419 = vlaneseq
        %v420 = vshrl.u32 %v419, 7
        %v421 = vsub.s32 %v418, %v420
        %v422 = vrot.slane %v415, %v421
        %v424 = vsel %vm396, %v422, 0.0
        %v425 = vadd.f32 %v405, %v424
        %v426 = vlaneseq
        %vm427 = vcmp.ge.s32.totalorder %v426, 0
        %vm428 = vcmp.lt.s32.totalorder %v426, 256
        %vm429 = vmand %vm427, %vm428
        %430 = vst.msk [vmem:[#allocation2] sm:$0x3] %vm429, %v425
        %v431 = vld [vmem:[#allocation3] sm:$0x3]
        %v432 = vsel %vm396, 1.0, 0.0
        %v433 = vadd.f32 %v431, %v432
        %434 = vst.msk [vmem:[#allocation3] sm:$0x3] %vm429, %v433
      $region36: #{cross_entropy_loss_2d.1} parent=27 // pred_fallthru
        _
      // Predicated region
      $region37: #{cross_entropy_loss_2d.1} parent=27 // pred_check
        %p435 = pneg %p400
      $region38: #{cross_entropy_loss_2d.1} parent=27 // pred_check_branch
        %437 = sbr.rel (%p435) target = $region40
      $region39: #{cross_entropy_loss_2d.1} parent=27 // pred_region
        %v438 = vlaneseq
        %v439 = vand.u32 %v438, 127
        %v440 = vadd.s32 %v439, 128
        %v441 = vstv %s398
        %v442 = vadd.s32 %v441, %v439
        %v443 = vadd.s32 %v441, %v440
        %vm444 = vcmp.lt.s32.totalorder %v442, 256
        %vm445 = vcmp.lt.s32.totalorder %v443, 256
        %v446 = vsel %vm444, 1, 0
        %v447 = vsel %vm445, 1, 0
        %v448 = vcombine.low %v446, %v447
        %v450 = vunpack.c.l.s4 1966171168
        %v451 = vunpack.c.0.s8 %v450
        %v452 = vlaneseq
        %v453 = vshrl.u32 %v452, 7
        %v454 = vsub.s32 %v451, %v453
        %v455 = vrot.slane %v448, %v454
        %v457 = vunpack.c.l.s4 1966171168
        %v458 = vunpack.c.0.s8 %v457
        %v459 = vlaneseq
        %v460 = vshrl.u32 %v459, 7
        %v461 = vsub.s32 %v458, %v460
        %v462 = vrot.slane %v455, %v461
        %vm463 = vcmp.ne.s32.totalorder %v462, 0
        %vm464 = vmand %vm396, %vm463
        %v465 = vld [vmem:[#allocation2] sm:$0x3]
        %v468 = vcombine.low %v394, %v395
        %v470 = vunpack.c.l.s4 1966171168
        %v471 = vunpack.c.0.s8 %v470
        %v472 = vlaneseq
        %v473 = vshrl.u32 %v472, 7
        %v474 = vsub.s32 %v471, %v473
        %v475 = vrot.slane %v468, %v474
        %v477 = vunpack.c.l.s4 1966171168
        %v478 = vunpack.c.0.s8 %v477
        %v479 = vlaneseq
        %v480 = vshrl.u32 %v479, 7
        %v481 = vsub.s32 %v478, %v480
        %v482 = vrot.slane %v475, %v481
        %v484 = vsel %vm464, %v482, 0.0
        %v485 = vadd.f32 %v465, %v484
        %v486 = vlaneseq
        %vm487 = vcmp.ge.s32.totalorder %v486, 0
        %vm488 = vcmp.lt.s32.totalorder %v486, 256
        %vm489 = vmand %vm487, %vm488
        %490 = vst.msk [vmem:[#allocation2] sm:$0x3] %vm489, %v485
        %v491 = vld [vmem:[#allocation3] sm:$0x3]
        %v492 = vsel %vm464, 1.0, 0.0
        %v493 = vadd.f32 %v491, %v492
        %494 = vst.msk [vmem:[#allocation3] sm:$0x3] %vm489, %v493
      $region40: #{cross_entropy_loss_2d.1} parent=27 // pred_fallthru
        _
      // Predicated region
      $region41: #{cross_entropy_loss_2d.1} parent=27 // pred_check
        %p495 = pneg %p306
      $region42: #{cross_entropy_loss_2d.1} parent=27 // pred_check_branch
        %497 = sbr.rel (%p495) target = $region44
      $region43: #{cross_entropy_loss_2d.1} parent=27 // pred_region
        %v498 = vld [vmem:[#allocation2] sm:$0x3]
        %v500 = vlaneseq
        %v501 = vshrl.u32 %v500, 7
        %v502 = vsub.s32 0, %v501
        %v503 = vrot.slane %v498, %v502
        %v504 = vlaneseq
        %v505 = vshrl.u32 %v504, 7
        %v506 = vsub.s32 1, %v505
        %v507 = vrot.slane %v498, %v506
        %vm510 = vcmask 1040384
        %v511 = vsel %vm510, %v503, 0.0
        %v512 = vsel %vm510, %v507, 0.0
        %v513 = vadd.f32 %v511, %v512
        %514 = vadd.xlane.f32.xlu0 %v513
        %v515 = vpop.xlane.xlu0 %514
        %vm516 = vcmask 0
        %517 = vst.msk [vmem:[%s298] sm:$0x1] %vm516, %v515
        %v518 = vld [vmem:[#allocation3] sm:$0x3]
        %v520 = vlaneseq
        %v521 = vshrl.u32 %v520, 7
        %v522 = vsub.s32 0, %v521
        %v523 = vrot.slane %v518, %v522
        %v524 = vlaneseq
        %v525 = vshrl.u32 %v524, 7
        %v526 = vsub.s32 1, %v525
        %v527 = vrot.slane %v518, %v526
        %v530 = vsel %vm510, %v523, 0.0
        %v531 = vsel %vm510, %v527, 0.0
        %v532 = vadd.f32 %v530, %v531
        %533 = vadd.xlane.f32.xlu0 %v532
        %v534 = vpop.xlane.xlu0 %533
        %535 = vst.msk [vmem:[%s305] sm:$0x1] %vm516, %v534
      $region44: #{cross_entropy_loss_2d.1} parent=27 // pred_fallthru
        _
      %p536 = scmp.lt.s32.totalorder %s20, 0
      %s537 = scalar_select %p536, %s20, 0
      %p538 = scmp.lt.s32.totalorder %s21, 1
      %s539 = scalar_select %p538, %s21, 1
      %s540 = smul.addr %s537, 2
      %s541 = sadd.s32 %s539, %s540
      %s542 = scalar_lea.vmem %s2, %s541
      %p543 = scmp.lt.s32.totalorder %s20, 0
      %s544 = scalar_select %p543, %s20, 0
      %p545 = scmp.lt.s32.totalorder %s21, 1
      %s546 = scalar_select %p545, %s21, 1
      %s547 = smul.addr %s544, 2
      %s548 = sadd.s32 %s546, %s547
      %s549 = scalar_lea.vmem %s3, %s548
      // Predicated region
      $region45: #{cross_entropy_loss_2d.1} parent=27 // pred_check
        %p550 = pneg %p122
      $region46: #{cross_entropy_loss_2d.1} parent=27 // pred_check_branch
        %552 = sbr.rel (%p550) target = $region48
      $region47: #{cross_entropy_loss_2d.1} parent=27 // pred_region
        _
      $region48: #{cross_entropy_loss_2d.1} parent=27 // pred_fallthru
        _
      // Predicated region
      $region49: #{cross_entropy_loss_2d.1} parent=27 // pred_check
        %p553 = pneg %p150
      $region50: #{cross_entropy_loss_2d.1} parent=27 // pred_check_branch
        %555 = sbr.rel (%p553) target = $region52
      $region51: #{cross_entropy_loss_2d.1} parent=27 // pred_region
        _
      $region52: #{cross_entropy_loss_2d.1} parent=27 // pred_fallthru
        _
    $region28: #{cross_entropy_loss_2d.1} parent=5 // pred_fallthru
      _
    %p556 = scmp.le.s32.totalorder 2, %s10
    // Predicated region
    $region53: #{cross_entropy_loss_2d.1} parent=5 // pred_check
      %p557 = pneg %p556
    $region54: #{cross_entropy_loss_2d.1} parent=5 // pred_check_branch
      %559 = sbr.rel (%p557) target = $region56
    $region55: #{cross_entropy_loss_2d.1} parent=5 // pred_region
      %s560 = ssub.s32 %s10, 2
      // Predicated region
      $region57: #{cross_entropy_loss_2d.1} parent=55 // pred_check
        %p561 = pneg %p128
      $region58: #{cross_entropy_loss_2d.1} parent=55 // pred_check_branch
        %563 = sbr.rel (%p561) target = $region60
      $region59: #{cross_entropy_loss_2d.1} parent=55 // pred_region
        %p564 = scmp.lt.s32.totalorder %s23, 0
        %s565 = scalar_select %p564, %s23, 0
        %p566 = scmp.lt.s32.totalorder %s24, 1
        %s567 = scalar_select %p566, %s24, 1
        %s568 = smul.addr %s565, 2
        %s569 = sadd.s32 %s567, %s568
        %s570 = scalar_lea.vmem %s2, %s569
      $region60: #{cross_entropy_loss_2d.1} parent=55 // pred_fallthru
        _
      // Predicated region
      $region61: #{cross_entropy_loss_2d.1} parent=55 // pred_check
        %p571 = pneg %p156
      $region62: #{cross_entropy_loss_2d.1} parent=55 // pred_check_branch
        %573 = sbr.rel (%p571) target = $region64
      $region63: #{cross_entropy_loss_2d.1} parent=55 // pred_region
        %p574 = scmp.lt.s32.totalorder %s23, 0
        %s575 = scalar_select %p574, %s23, 0
        %p576 = scmp.lt.s32.totalorder %s24, 1
        %s577 = scalar_select %p576, %s24, 1
        %s578 = smul.addr %s575, 2
        %s579 = sadd.s32 %s577, %s578
        %s580 = scalar_lea.vmem %s3, %s579
      $region64: #{cross_entropy_loss_2d.1} parent=55 // pred_fallthru
        _
    $region56: #{cross_entropy_loss_2d.1} parent=5 // pred_fallthru
      _
  $region6: #{cross_entropy_loss_2d.1} parent=0 // loop_footer
    %s14 = sadd.s32 1, %s10
  $region7: #{cross_entropy_loss_2d.1} parent=0 // loop_footer_branch
    %9 = sbr.rel target = $region3
  $region8: #{cross_entropy_loss_2d.1} parent=0 // loop_exit
    _

</llo_original>
